<compile_context>
chip_gen: v7x
topology: tpu7x:2x2x1
jax: 0.10.0
libtpu: 0.0.40
codegen_flags: <defaults>
</compile_context>

<pallas_src>
import jax
import jax.numpy as jnp
from jax.experimental import pallas as pl
from jax.experimental.pallas import tpu as pltpu

SMOOTH = 0.1
_SUBLANE = 8
_LANE = 128


def _make_kernel(block_rows, steps, width):
    def kernel(pred_ref, true_ref, cls_ref, out_ref, inter_acc, denom_acc):
        s = pl.program_id(0)   # shard (parallel)
        i = pl.program_id(1)   # step within shard (arbitrary / carried)

        @pl.when(i == 0)
        def _():
            inter_acc[...] = jnp.zeros_like(inter_acc)
            denom_acc[...] = jnp.zeros_like(denom_acc)

        # Per-row selection weights for this block, sliced from the resident
        # (N_pad, 1) cls array (loaded into VMEM once, no per-step DMA).
        start = pl.multiple_of((s * steps + i) * block_rows, _SUBLANE)
        w = (cls_ref[pl.ds(start, block_rows), :] > 0.5).astype(jnp.float32)  # (R, 1)

        p = pred_ref[...].astype(jnp.float32)      # (R, W)
        t = true_ref[...].astype(jnp.float32)      # (R, W)

        w_pt = w * (p * t)                         # weighted intersection terms
        w_st = w * (p + t)                         # weighted denominator terms

        # Fold the row axis into sublane groups: (R, W) -> (R//8, 8, W) is a
        # tile-aligned relabel and the axis-0 sum is a chain of full-vreg VPU
        # adds, so the steady-state loop does no cross-lane (XLU) work.
        groups = block_rows // _SUBLANE
        inter_acc[...] += jnp.sum(w_pt.reshape(groups, _SUBLANE, width), axis=0)
        denom_acc[...] += jnp.sum(w_st.reshape(groups, _SUBLANE, width), axis=0)

        @pl.when(i == steps - 1)
        def _():
            out_ref[0, 0, :, :] = inter_acc[...]
            out_ref[0, 1, :, :] = denom_acc[...]

    return kernel


def mask_loss(mask_pred, cls_pred, mask_true, *, target_block_rows=2048):
    """Pallas implementation of MaskLoss.forward.

    mask_pred, mask_true : (B, S, H, W) float
    cls_pred             : (B, S) float
    Returns scalar float32 loss.
    """
    assert mask_pred.shape == mask_true.shape
    B, S, H, W = mask_pred.shape
    assert cls_pred.shape == (B, S)
    N = B * S

    # H=0 slice (matches y_pred[:, 0] in DiceLoss), kept in NATIVE dtype; the
    # f32 cast happens inside the kernel so bf16 inputs DMA at half the bytes.
    # TODO(synk): fuse this slice into the kernel (pl.ANY + strided
    #             make_async_copy) to drop the extra wrapper-side HBM pass.
    pred2d = mask_pred[:, :, 0, :].reshape(N, W)
    true2d = mask_true[:, :, 0, :].reshape(N, W)
    cls2d = cls_pred.reshape(N, 1)

    # ---- block sizing --------------------------------------------------------
    # Budget ~4 MiB per streamed input block (2 inputs x 2 pipeline buffers
    # ~= 16 MiB of input buffering), which fits v7x's smaller VMEM with room to
    # spare under the explicit 48 MiB scoped limit below.
    lane_padded_w = -(-W // _LANE) * _LANE
    bytes_per_row = lane_padded_w * 4
    max_rows_by_vmem = max(_SUBLANE, (4 * 1024 * 1024) // bytes_per_row)
    block_rows = int(min(target_block_rows, max_rows_by_vmem))
    block_rows = max(_SUBLANE, (block_rows // _SUBLANE) * _SUBLANE)

    num_shards = 2 if N >= 2 * _SUBLANE else 1   # v7x: one shard per TensorCore
    rows_per_shard = -(-N // num_shards)
    rows_per_shard = -(-rows_per_shard // _SUBLANE) * _SUBLANE
    block_rows = min(block_rows, rows_per_shard)
    steps = -(-rows_per_shard // block_rows)
    # Re-balance the block so padding is minimal (still a multiple of 8).
    block_rows = -(-(-(-rows_per_shard // steps)) // _SUBLANE) * _SUBLANE
    n_pad = num_shards * steps * block_rows

    if n_pad != N:
        pad = n_pad - N
        pred2d = jnp.pad(pred2d, ((0, pad), (0, 0)))
        true2d = jnp.pad(true2d, ((0, pad), (0, 0)))
        cls2d = jnp.pad(cls2d, ((0, pad), (0, 0)))   # cls=0 -> weight 0, no effect

    kernel = _make_kernel(block_rows, steps, W)

    partials = pl.pallas_call(
        kernel,
        out_shape=jax.ShapeDtypeStruct((num_shards, 2, _SUBLANE, W), jnp.float32),
        grid_spec=pltpu.PrefetchScalarGridSpec(
            num_scalar_prefetch=0,
            grid=(num_shards, steps),
            in_specs=[
                pl.BlockSpec((block_rows, W), lambda s, i: (s * steps + i, 0)),
                pl.BlockSpec((block_rows, W), lambda s, i: (s * steps + i, 0)),
                # Whole cls array resident in VMEM (tiny); sliced in-kernel.
                pl.BlockSpec(memory_space=pltpu.MemorySpace.VMEM),
            ],
            out_specs=pl.BlockSpec((1, 2, _SUBLANE, W),
                                   lambda s, i: (s, 0, 0, 0)),
            scratch_shapes=[
                pltpu.VMEM((_SUBLANE, W), jnp.float32),   # intersection partial
                pltpu.VMEM((_SUBLANE, W), jnp.float32),   # denominator partial
            ],
        ),
        compiler_params=pltpu.CompilerParams(
            dimension_semantics=("parallel", "arbitrary"),
            vmem_limit_bytes=48 * 1024 * 1024,
        ),
    )(pred2d, true2d, cls2d)

    # Final cross-lane/shard reduction + Dice, done once on tiny data.
    sums = jnp.sum(partials, axis=(0, 2, 3))         # (2,): [intersection, sum(p)+sum(t)]
    dsc = (2.0 * sums[0] + SMOOTH) / (sums[1] + SMOOTH)
    return (1.0 - dsc).astype(jnp.float32)


def mask_loss_ref(mask_pred, cls_pred, mask_true):
    """Pure-JAX reference (same masked-sum rewrite of the boolean gather)."""
    w = (cls_pred > 0.5).astype(jnp.float32)[:, :, None]     # (B, S, 1)
    p = mask_pred[:, :, 0, :].astype(jnp.float32)            # (B, S, W)
    t = mask_true[:, :, 0, :].astype(jnp.float32)
    inter = jnp.sum(w * p * t)
    denom = jnp.sum(w * p) + jnp.sum(w * t)
    dsc = (2.0 * inter + SMOOTH) / (denom + SMOOTH)
    return 1.0 - dsc


if __name__ == "__main__":
    key = jax.random.PRNGKey(0)
    k1, k2, k3 = jax.random.split(key, 3)

    B, S, H, W = 2, 8, 16, 16   # S grid cells, HxW masks
    mask_pred = jax.nn.sigmoid(jax.random.normal(k1, (B, S, H, W), jnp.float32))
    mask_true = (jax.random.uniform(k2, (B, S, H, W)) > 0.5).astype(jnp.float32)
    cls_pred = jax.random.uniform(k3, (B, S), jnp.float32)

    loss_fn = jax.jit(mask_loss)
    loss = jax.block_until_ready(loss_fn(mask_pred, cls_pred, mask_true))
    ref = jax.block_until_ready(mask_loss_ref(mask_pred, cls_pred, mask_true))

    assert jnp.allclose(loss, ref, atol=1e-5, rtol=1e-5), (loss, ref)
    print("KERNEL_OK")
</pallas_src>

<mosaic_0001>
module attributes {stable_mosaic.version = 11 : i64} {
  func.func @kernel(%arg0: i32, %arg1: i32, %arg2: memref<8x16xf32, #tpu.memory_space<vmem>>, %arg3: memref<8x16xf32, #tpu.memory_space<vmem>>, %arg4: memref<16x1xf32, #tpu.memory_space<vmem>>, %arg5: memref<1x2x8x16xf32, #tpu.memory_space<vmem>>, %arg6: memref<8x16xf32, #tpu.memory_space<vmem>>, %arg7: memref<8x16xf32, #tpu.memory_space<vmem>>) attributes {dimension_semantics = [#tpu.dimension_semantics<parallel>, #tpu.dimension_semantics<arbitrary>], iteration_bounds = array<i64: 2, 1>, scalar_prefetch = 0 : i64, scratch_operands = 2 : i64, tpu.core_type = #tpu.core_type<tc>, window_params = [{transform_indices = @transform_0, window_bounds = array<i64: 8, 16>}, {transform_indices = @transform_1, window_bounds = array<i64: 8, 16>}, {pipeline_mode = #tpu.pipeline_mode<synchronous>, transform_indices = @transform_2, window_bounds = array<i64: 16, 1>}, {transform_indices = @transform_3, window_bounds = array<i64: 1, 2, 8, 16>}]} {
    %c0_i32 = arith.constant 0 : i32
    %0 = arith.cmpi eq, %arg1, %c0_i32 : i32
    %1 = arith.extui %0 : i1 to i32
    %c0_i32_0 = arith.constant 0 : i32
    %2 = arith.cmpi ne, %1, %c0_i32_0 : i32
    scf.if %2 {
      %cst_17 = arith.constant 0.000000e+00 : f32
      %34 = vector.broadcast %cst_17 : f32 to vector<8x16xf32>
      %c0_18 = arith.constant 0 : index
      %c0_19 = arith.constant 0 : index
      %35 = vector.load %arg6[%c0_18, %c0_19] : memref<8x16xf32, #tpu.memory_space<vmem>>, vector<8x16xf32>
      tpu.vector_store %arg6[%c0_18, %c0_19], %34 {strides = array<i32>} : memref<8x16xf32, #tpu.memory_space<vmem>>, vector<8x16xf32>,
      %cst_20 = arith.constant 0.000000e+00 : f32
      %36 = vector.broadcast %cst_20 : f32 to vector<8x16xf32>
      %c0_21 = arith.constant 0 : index
      %c0_22 = arith.constant 0 : index
      %37 = vector.load %arg7[%c0_21, %c0_22] : memref<8x16xf32, #tpu.memory_space<vmem>>, vector<8x16xf32>
      tpu.vector_store %arg7[%c0_21, %c0_22], %36 {strides = array<i32>} : memref<8x16xf32, #tpu.memory_space<vmem>>, vector<8x16xf32>,
    } else {
    }
    %c1_i32 = arith.constant 1 : i32
    %3 = arith.muli %arg0, %c1_i32 : i32
    %4 = arith.addi %3, %arg1 : i32
    %c8_i32 = arith.constant 8 : i32
    %5 = arith.muli %4, %c8_i32 : i32
    %6 = tpu.assume_multiple %5, 8 : i32
    %7 = arith.index_cast %6 : i32 to index
    %c0 = arith.constant 0 : index
    %8 = vector.load %arg4[%7, %c0] : memref<16x1xf32, #tpu.memory_space<vmem>>, vector<8x1xf32>
    %cst = arith.constant 5.000000e-01 : f32
    %9 = vector.broadcast %cst : f32 to vector<8x1xf32>
    %10 = arith.cmpf ogt, %8, %9 : vector<8x1xf32>
    %11 = arith.extui %10 : vector<8x1xi1> to vector<8x1xi32>
    %12 = arith.sitofp %11 : vector<8x1xi32> to vector<8x1xf32>
    %c0_1 = arith.constant 0 : index
    %c0_2 = arith.constant 0 : index
    %13 = vector.load %arg2[%c0_1, %c0_2] : memref<8x16xf32, #tpu.memory_space<vmem>>, vector<8x16xf32>
    %c0_3 = arith.constant 0 : index
    %c0_4 = arith.constant 0 : index
    %14 = vector.load %arg3[%c0_3, %c0_4] : memref<8x16xf32, #tpu.memory_space<vmem>>, vector<8x16xf32>
    %15 = arith.mulf %13, %14 : vector<8x16xf32>
    %16 = vector.broadcast %12 : vector<8x1xf32> to vector<8x16xf32>
    %17 = arith.mulf %16, %15 : vector<8x16xf32>
    %18 = arith.addf %13, %14 : vector<8x16xf32>
    %19 = vector.broadcast %12 : vector<8x1xf32> to vector<8x16xf32>
    %20 = arith.mulf %19, %18 : vector<8x16xf32>
    %c0_5 = arith.constant 0 : index
    %c0_6 = arith.constant 0 : index
    %21 = vector.load %arg6[%c0_5, %c0_6] : memref<8x16xf32, #tpu.memory_space<vmem>>, vector<8x16xf32>
    %22 = vector.shape_cast %17 : vector<8x16xf32> to vector<1x8x16xf32>
    %cst_7 = arith.constant dense<0.000000e+00> : vector<8x16xf32>
    %23 = vector.multi_reduction <add>, %22, %cst_7 [0] : vector<1x8x16xf32> to vector<8x16xf32>
    %24 = arith.addf %21, %23 : vector<8x16xf32>
    %c0_8 = arith.constant 0 : index
    %c0_9 = arith.constant 0 : index
    %25 = vector.load %arg6[%c0_8, %c0_9] : memref<8x16xf32, #tpu.memory_space<vmem>>, vector<8x16xf32>
    tpu.vector_store %arg6[%c0_8, %c0_9], %24 {strides = array<i32>} : memref<8x16xf32, #tpu.memory_space<vmem>>, vector<8x16xf32>,
    %c0_10 = arith.constant 0 : index
    %c0_11 = arith.constant 0 : index
    %26 = vector.load %arg7[%c0_10, %c0_11] : memref<8x16xf32, #tpu.memory_space<vmem>>, vector<8x16xf32>
    %27 = vector.shape_cast %20 : vector<8x16xf32> to vector<1x8x16xf32>
    %cst_12 = arith.constant dense<0.000000e+00> : vector<8x16xf32>
    %28 = vector.multi_reduction <add>, %27, %cst_12 [0] : vector<1x8x16xf32> to vector<8x16xf32>
    %29 = arith.addf %26, %28 : vector<8x16xf32>
    %c0_13 = arith.constant 0 : index
    %c0_14 = arith.constant 0 : index
    %30 = vector.load %arg7[%c0_13, %c0_14] : memref<8x16xf32, #tpu.memory_space<vmem>>, vector<8x16xf32>
    tpu.vector_store %arg7[%c0_13, %c0_14], %29 {strides = array<i32>} : memref<8x16xf32, #tpu.memory_space<vmem>>, vector<8x16xf32>,
    %c0_i32_15 = arith.constant 0 : i32
    %31 = arith.cmpi eq, %arg1, %c0_i32_15 : i32
    %32 = arith.extui %31 : i1 to i32
    %c0_i32_16 = arith.constant 0 : i32
    %33 = arith.cmpi ne, %32, %c0_i32_16 : i32
    scf.if %33 {
      %c0_17 = arith.constant 0 : index
      %c0_18 = arith.constant 0 : index
      %34 = vector.load %arg6[%c0_17, %c0_18] : memref<8x16xf32, #tpu.memory_space<vmem>>, vector<8x16xf32>
      %c0_19 = arith.constant 0 : index
      %c0_20 = arith.constant 0 : index
      %c0_21 = arith.constant 0 : index
      %c0_22 = arith.constant 0 : index
      %35 = vector.load %arg5[%c0_19, %c0_20, %c0_21, %c0_22] : memref<1x2x8x16xf32, #tpu.memory_space<vmem>>, vector<1x1x8x16xf32>
      %36 = vector.shape_cast %35 : vector<1x1x8x16xf32> to vector<8x16xf32>
      %37 = vector.shape_cast %34 : vector<8x16xf32> to vector<1x1x8x16xf32>
      tpu.vector_store %arg5[%c0_19, %c0_20, %c0_21, %c0_22], %37 {strides = array<i32>} : memref<1x2x8x16xf32, #tpu.memory_space<vmem>>, vector<1x1x8x16xf32>,
      %c0_23 = arith.constant 0 : index
      %c0_24 = arith.constant 0 : index
      %38 = vector.load %arg7[%c0_23, %c0_24] : memref<8x16xf32, #tpu.memory_space<vmem>>, vector<8x16xf32>
      %c0_25 = arith.constant 0 : index
      %c1 = arith.constant 1 : index
      %c0_26 = arith.constant 0 : index
      %c0_27 = arith.constant 0 : index
      %39 = vector.load %arg5[%c0_25, %c1, %c0_26, %c0_27] : memref<1x2x8x16xf32, #tpu.memory_space<vmem>>, vector<1x1x8x16xf32>
      %40 = vector.shape_cast %39 : vector<1x1x8x16xf32> to vector<8x16xf32>
      %41 = vector.shape_cast %38 : vector<8x16xf32> to vector<1x1x8x16xf32>
      tpu.vector_store %arg5[%c0_25, %c1, %c0_26, %c0_27], %41 {strides = array<i32>} : memref<1x2x8x16xf32, #tpu.memory_space<vmem>>, vector<1x1x8x16xf32>,
    } else {
    }
    return
  }
  func.func @transform_0(%arg0: i32, %arg1: i32) -> (i32, i32) {
    %c1_i32 = arith.constant 1 : i32
    %0 = arith.muli %arg0, %c1_i32 : i32
    %1 = arith.addi %0, %arg1 : i32
    %c0_i32 = arith.constant 0 : i32
    %c0_i32_0 = arith.constant 0 : i32
    return %1, %c0_i32 : i32, i32
  }
  func.func @transform_1(%arg0: i32, %arg1: i32) -> (i32, i32) {
    %c1_i32 = arith.constant 1 : i32
    %0 = arith.muli %arg0, %c1_i32 : i32
    %1 = arith.addi %0, %arg1 : i32
    %c0_i32 = arith.constant 0 : i32
    %c0_i32_0 = arith.constant 0 : i32
    return %1, %c0_i32 : i32, i32
  }
  func.func @transform_2(%arg0: i32, %arg1: i32) -> (i32, i32) {
    %c0_i32 = arith.constant 0 : i32
    %c0_i32_0 = arith.constant 0 : i32
    %c0_i32_1 = arith.constant 0 : i32
    return %c0_i32, %c0_i32_0 : i32, i32
  }
  func.func @transform_3(%arg0: i32, %arg1: i32) -> (i32, i32, i32, i32) {
    %c0_i32 = arith.constant 0 : i32
    %c0_i32_0 = arith.constant 0 : i32
    %c0_i32_1 = arith.constant 0 : i32
    %c0_i32_2 = arith.constant 0 : i32
    return %arg0, %c0_i32, %c0_i32_0, %c0_i32_1 : i32, i32, i32, i32
  }
}

</mosaic_0001>

<llo_original>
// kernel: mask_loss.1
$region0: #{mask_loss.1}
  #allocation0 [shape = 'u32[]', space=smem, size = 0x4, offset = 0x4, fixed_abs, tag = 'smem constant byte address 0x4 - core index']
  #allocation1 [shape = 'u32[144,128]{1,0:T(1,128)}', space=vmem, size = 0x12000, scoped, tag = 'internal scratch']
  #allocation2 [shape = 'f32[8,16]{1,0:T(8,128)}', space=vmem, size = 0x1000, scoped, tag = 'scratch operand']
  #allocation3 [shape = 'f32[8,16]{1,0:T(8,128)}', space=vmem, size = 0x1000, scoped, tag = 'scratch operand']
  %s0 = inlined_call_operand.vmem [shape: f32[16,16], index: 0, kind: input, shape index: {}]
  %s1 = inlined_call_operand.vmem [shape: f32[16,16], index: 1, kind: input, shape index: {}]
  %s2 = inlined_call_operand.vmem [shape: f32[16,1], index: 2, kind: input, shape index: {}]
  %s3 = inlined_call_operand.vmem [shape: f32[2,2,8,16], index: 3, kind: output, shape index: {}]
  %s4 = sld [smem:[#allocation0]]
  $region53: #{mask_loss.1} parent=0
    _
  %s6 = ssub.s32 1, %s4
  %s7 = scalar_select 0, %s6, %s4
  loop: start=0, step=1, limit=4
  $region2: #{mask_loss.1} parent=0 // loop_pre_header
    _
  $region3: #{mask_loss.1} parent=0 // loop_header
    %s9 = sphi 0, %s13
    %p10 = scmp.ge.s32.totalorder %s9, 4
    %s16 = sphi 0, %s28
    %s17 = sphi 0, %s24
    %s18 = sphi 0, %s16
    %s19 = sphi 0, %s17
    %s20 = sphi 0, %s18
    %s21 = sphi 0, %s19
    %s33 = sphi 0, %s35
    %s36 = sphi 0, %s33
    %s37 = sphi 0, %s36
    %s53 = sphi 0, %s37
    %s61 = sphi 0, %s63
    %s64 = sphi 0, %s61
    %s65 = sphi 0, %s64
    %s81 = sphi 0, %s65
    %s85 = sphi 0, %s85
    %s87 = sphi 0, %s85
    %s88 = sphi 0, %s87
    %s102 = sphi 0, %s88
    %s108 = sphi 0, %s110
    %s111 = sphi 0, %s108
    %s112 = sphi 0, %s111
    %s128 = sphi 0, %s112
  $region4: #{mask_loss.1} parent=0 // loop_header_branch
    %12 = sbr.rel (%p10) target = $region8
  $region5: #{mask_loss.1} parent=0 // loop_body
    %s14 = ssub.s32 %s9, 1
    %s15 = ssub.s32 %s9, 2
    %s22 = sadd.s32 1, %s17
    %p23 = scmp.ge.s32.totalorder %s22, 1
    %s24 = scalar_select %p23, 0, %s22
    %s25 = sadd.s32 1, %s16
    %s26 = scalar_select %p23, %s25, %s16
    %p27 = scmp.ge.s32.totalorder %s26, 2
    %s28 = scalar_select %p27, 0, %s26
    %s29 = sadd.s32 %s16, %s17
    %s30 = sadd.s32 %s28, %s24
    %s31 = ssub.s32 %s29, %s30
    %p32 = scmp.eq.s32.totalorder %s31, 0
    %s34 = sadd.s32 %s33, 1
    %s35 = scalar_select %p32, %s33, %s34
    %p38 = pneg %p32
    %p39 = scmp.eq.s32.totalorder %s9, 1
    %p40 = por %p38, %p39
    %p41 = scmp.ne.s32.totalorder %s33, %s36
    %p42 = scmp.eq.s32.totalorder %s9, 0
    %p43 = por %p41, %p42
    %p44 = scmp.ne.s32.totalorder %s33, %s36
    %p45 = scmp.eq.s32.totalorder %s14, 1
    %p46 = por %p44, %p45
    %p47 = scmp.ne.s32.totalorder %s36, %s37
    %p48 = scmp.eq.s32.totalorder %s14, 0
    %p49 = por %p47, %p48
    %p50 = scmp.ne.s32.totalorder %s36, %s37
    %p51 = scmp.eq.s32.totalorder %s15, 1
    %p52 = por %p50, %p51
    %p54 = scmp.ne.s32.totalorder %s37, %s53
    %p55 = scmp.eq.s32.totalorder %s15, 0
    %p56 = por %p54, %p55
    %s57 = sadd.s32 %s16, %s17
    %s58 = sadd.s32 %s28, %s24
    %s59 = ssub.s32 %s57, %s58
    %p60 = scmp.eq.s32.totalorder %s59, 0
    %s62 = sadd.s32 %s61, 1
    %s63 = scalar_select %p60, %s61, %s62
    %p66 = pneg %p60
    %p67 = scmp.eq.s32.totalorder %s9, 1
    %p68 = por %p66, %p67
    %p69 = scmp.ne.s32.totalorder %s61, %s64
    %p70 = scmp.eq.s32.totalorder %s9, 0
    %p71 = por %p69, %p70
    %p72 = scmp.ne.s32.totalorder %s61, %s64
    %p73 = scmp.eq.s32.totalorder %s14, 1
    %p74 = por %p72, %p73
    %p75 = scmp.ne.s32.totalorder %s64, %s65
    %p76 = scmp.eq.s32.totalorder %s14, 0
    %p77 = por %p75, %p76
    %p78 = scmp.ne.s32.totalorder %s64, %s65
    %p79 = scmp.eq.s32.totalorder %s15, 1
    %p80 = por %p78, %p79
    %p82 = scmp.ne.s32.totalorder %s65, %s81
    %p83 = scmp.eq.s32.totalorder %s15, 0
    %p84 = por %p82, %p83
    %s86 = sadd.s32 %s85, 1
    %p89 = scmp.eq.s32.totalorder %s9, 1
    %p90 = scmp.ne.s32.totalorder %s85, %s87
    %p91 = scmp.eq.s32.totalorder %s9, 0
    %p92 = por %p90, %p91
    %p93 = scmp.ne.s32.totalorder %s85, %s87
    %p94 = scmp.eq.s32.totalorder %s14, 1
    %p95 = por %p93, %p94
    %p96 = scmp.ne.s32.totalorder %s87, %s88
    %p97 = scmp.eq.s32.totalorder %s14, 0
    %p98 = por %p96, %p97
    %p99 = scmp.ne.s32.totalorder %s87, %s88
    %p100 = scmp.eq.s32.totalorder %s15, 1
    %p101 = por %p99, %p100
    %p103 = scmp.ne.s32.totalorder %s88, %s102
    %p104 = scmp.eq.s32.totalorder %s15, 0
    %p105 = por %p103, %p104
    %s106 = ssub.s32 %s16, %s28
    %p107 = scmp.eq.s32.totalorder %s106, 0
    %s109 = sadd.s32 %s108, 1
    %s110 = scalar_select %p107, %s108, %s109
    %p113 = pneg %p107
    %p114 = scmp.eq.s32.totalorder %s9, 1
    %p115 = por %p113, %p114
    %p116 = scmp.ne.s32.totalorder %s108, %s111
    %p117 = scmp.eq.s32.totalorder %s9, 0
    %p118 = por %p116, %p117
    %p119 = scmp.ne.s32.totalorder %s108, %s111
    %p120 = scmp.eq.s32.totalorder %s14, 1
    %p121 = por %p119, %p120
    %p122 = scmp.ne.s32.totalorder %s111, %s112
    %p123 = scmp.eq.s32.totalorder %s14, 0
    %p124 = por %p122, %p123
    %p125 = scmp.ne.s32.totalorder %s111, %s112
    %p126 = scmp.eq.s32.totalorder %s15, 1
    %p127 = por %p125, %p126
    %p129 = scmp.ne.s32.totalorder %s112, %s128
    %p130 = scmp.eq.s32.totalorder %s15, 0
    %p131 = por %p129, %p130
    %p132 = scmp.le.s32.totalorder 1, %s9
    %p133 = scmp.lt.s32.totalorder %s9, 3
    %p134 = pnand %p132, %p133
    %p135 = pneg %p134
    // Predicated region
    $region9: #{mask_loss.1} parent=5 // pred_check
      _
    $region10: #{mask_loss.1} parent=5 // pred_check_branch
      %137 = sbr.rel (%p134) target = $region12
    $region11: #{mask_loss.1} parent=5 // pred_region
      %s138 = ssub.s32 %s9, 1
      // Predicated region
      $region13: #{mask_loss.1} parent=11 // pred_check
        %p139 = pneg %p98
      $region14: #{mask_loss.1} parent=11 // pred_check_branch
        %141 = sbr.rel (%p139) target = $region16
      $region15: #{mask_loss.1} parent=11 // pred_region
        _
      $region16: #{mask_loss.1} parent=11 // pred_fallthru
        _
    $region12: #{mask_loss.1} parent=5 // pred_fallthru
      _
    %p142 = scmp.lt.s32.totalorder %s9, 2
    // Predicated region
    $region17: #{mask_loss.1} parent=5 // pred_check
      %p143 = pneg %p142
    $region18: #{mask_loss.1} parent=5 // pred_check_branch
      %145 = sbr.rel (%p143) target = $region20
    $region19: #{mask_loss.1} parent=5 // pred_region
      // Predicated region
      $region21: #{mask_loss.1} parent=19 // pred_check
        %p146 = pneg %p43
      $region22: #{mask_loss.1} parent=19 // pred_check_branch
        %148 = sbr.rel (%p146) target = $region24
      $region23: #{mask_loss.1} parent=19 // pred_region
        %s149 = sadd.s32 %s16, %s17
        %p150 = scmp.lt.s32.totalorder %s149, 1
        %s151 = scalar_select %p150, %s149, 1
        %s152 = smul.addr %s151, 8
        %s153 = scalar_lea.vmem %s0, %s152
        %s154 = sadd.s32 %s16, %s17
      $region24: #{mask_loss.1} parent=19 // pred_fallthru
        _
      // Predicated region
      $region25: #{mask_loss.1} parent=19 // pred_check
        %p155 = pneg %p71
      $region26: #{mask_loss.1} parent=19 // pred_check_branch
        %157 = sbr.rel (%p155) target = $region28
      $region27: #{mask_loss.1} parent=19 // pred_region
        %s158 = sadd.s32 %s16, %s17
        %p159 = scmp.lt.s32.totalorder %s158, 1
        %s160 = scalar_select %p159, %s158, 1
        %s161 = smul.addr %s160, 8
        %s162 = scalar_lea.vmem %s1, %s161
        %s163 = sadd.s32 %s16, %s17
      $region28: #{mask_loss.1} parent=19 // pred_fallthru
        _
    $region20: #{mask_loss.1} parent=5 // pred_fallthru
      _
    %p164 = scmp.le.s32.totalorder 1, %s9
    %p165 = scmp.lt.s32.totalorder %s9, 3
    %p166 = pnand %p164, %p165
    %p167 = pneg %p166
    // Predicated region
    $region29: #{mask_loss.1} parent=5 // pred_check
      _
    $region30: #{mask_loss.1} parent=5 // pred_check_branch
      %169 = sbr.rel (%p166) target = $region32
    $region31: #{mask_loss.1} parent=5 // pred_region
      %s170 = ssub.s32 %s9, 1
      %s171 = sadd.s32 %s18, %s19
      %p172 = scmp.lt.s32.totalorder %s171, 1
      %s173 = scalar_select %p172, %s171, 1
      %s174 = smul.addr %s173, 8
      %s175 = scalar_lea.vmem %s0, %s174
      %p176 = pneg %p49
      %p177 = pneg %p46
      %s178 = sadd.s32 %s18, %s19
      %p179 = scmp.lt.s32.totalorder %s178, 1
      %s180 = scalar_select %p179, %s178, 1
      %s181 = smul.addr %s180, 8
      %s182 = scalar_lea.vmem %s1, %s181
      %p183 = pneg %p77
      %p184 = pneg %p74
      %p185 = pneg %p98
      %p186 = pneg %p95
      %p187 = pneg %p124
      %p188 = pneg %p121
      %p189 = scmp.lt.s32.totalorder %s18, 1
      %s190 = scalar_select %p189, %s18, 1
      %s191 = smul.addr %s190, 2
      %s192 = smul.addr %s191, 8
      %s193 = scalar_lea.vmem %s3, %s192
      %s194 = sadd.s32 %s18, %s19
      %p195 = scmp.lt.s32.totalorder %s194, 1
      %s196 = scalar_select %p195, %s194, 1
      %s197 = smul.addr %s196, 8
      %s198 = scalar_lea.vmem %s0, %s197
      %s199 = sadd.s32 %s18, %s19
      %s200 = sadd.s32 %s18, %s19
      %p201 = scmp.lt.s32.totalorder %s200, 1
      %s202 = scalar_select %p201, %s200, 1
      %s203 = smul.addr %s202, 8
      %s204 = scalar_lea.vmem %s1, %s203
      %s205 = sadd.s32 %s18, %s19
      %p206 = scmp.lt.s32.totalorder %s18, 1
      %s207 = scalar_select %p206, %s18, 1
      %s208 = smul.addr %s207, 2
      %s209 = smul.addr %s208, 8
      %s210 = scalar_lea.vmem %s3, %s209
      %p211 = scmp.eq.s32.totalorder %s19, 0
      // Predicated region
      $region33: #{mask_loss.1} parent=31 // pred_check
        %p212 = pneg %p211
      $region34: #{mask_loss.1} parent=31 // pred_check_branch
        %214 = sbr.rel (%p212) target = $region36
      $region35: #{mask_loss.1} parent=31 // pred_region
        %vm215 = vcmask 130048
        %216 = vst.msk [vmem:[#allocation2] sm:$0xff] %vm215, 0.0
        %217 = vst.msk [vmem:[#allocation3] sm:$0xff] %vm215, 0.0
      $region36: #{mask_loss.1} parent=31 // pred_fallthru
        _
      %s218 = sadd.s32 %s18, %s19
      %s219 = smul.u32 %s218, 8
      %s220 = scalar_lea.vmem %s2, %s219
      %v221 = vld [vmem:[%s220] sm:$0xff]
      %vm222 = vcmp.gt.f32.partialorder %v221, 0.5
      %v223 = vsel %vm222, 1, 0
      %v224 = vcvt.s32.f32 %v223
      %v225 = vld [vmem:[%s198] sm:$0xff]
      %v226 = vld [vmem:[%s204] sm:$0xff]
      %v227 = vmul.f32 %v225, %v226
      %229 = vset.pattern.permute.xlu0 0
      %230 = vperm.xlu0 %229, %v224
      %v231 = vpop.permute.xlu0 %230
      %v233 = vmul.f32 %v231, %v227
      %v234 = vadd.f32 %v225, %v226
      %v235 = vmul.f32 %v231, %v234
      %v236 = vld [vmem:[#allocation2] sm:$0xff]
      %v237 = vadd.f32 %v233, 0.0
      %v238 = vadd.f32 %v236, %v237
      %vm239 = vcmask 130048
      %240 = vst.msk [vmem:[#allocation2] sm:$0xff] %vm239, %v238
      %v241 = vld [vmem:[#allocation3] sm:$0xff]
      %v242 = vadd.f32 %v235, 0.0
      %v243 = vadd.f32 %v241, %v242
      %244 = vst.msk [vmem:[#allocation3] sm:$0xff] %vm239, %v243
      // Predicated region
      $region37: #{mask_loss.1} parent=31 // pred_check
        %p245 = pneg %p211
      $region38: #{mask_loss.1} parent=31 // pred_check_branch
        %247 = sbr.rel (%p245) target = $region40
      $region39: #{mask_loss.1} parent=31 // pred_region
        %v248 = vld [vmem:[#allocation2] sm:$0xff]
        %249 = vst.msk [vmem:[%s210] sm:$0xff] %vm239, %v248
        %v250 = vld [vmem:[#allocation3] sm:$0xff]
        %s251 = scalar_lea.vmem %s210, 8
        %252 = vst.msk [vmem:[%s251] sm:$0xff] %vm239, %v250
      $region40: #{mask_loss.1} parent=31 // pred_fallthru
        _
      %p253 = scmp.lt.s32.totalorder %s18, 1
      %s254 = scalar_select %p253, %s18, 1
      %s255 = smul.addr %s254, 2
      %s256 = smul.addr %s255, 8
      %s257 = scalar_lea.vmem %s3, %s256
      // Predicated region
      $region41: #{mask_loss.1} parent=31 // pred_check
        %p258 = pneg %p121
      $region42: #{mask_loss.1} parent=31 // pred_check_branch
        %260 = sbr.rel (%p258) target = $region44
      $region43: #{mask_loss.1} parent=31 // pred_region
        _
      $region44: #{mask_loss.1} parent=31 // pred_fallthru
        _
    $region32: #{mask_loss.1} parent=5 // pred_fallthru
      _
    %p261 = scmp.le.s32.totalorder 2, %s9
    // Predicated region
    $region45: #{mask_loss.1} parent=5 // pred_check
      %p262 = pneg %p261
    $region46: #{mask_loss.1} parent=5 // pred_check_branch
      %264 = sbr.rel (%p262) target = $region48
    $region47: #{mask_loss.1} parent=5 // pred_region
      %s265 = ssub.s32 %s9, 2
      // Predicated region
      $region49: #{mask_loss.1} parent=47 // pred_check
        %p266 = pneg %p127
      $region50: #{mask_loss.1} parent=47 // pred_check_branch
        %268 = sbr.rel (%p266) target = $region52
      $region51: #{mask_loss.1} parent=47 // pred_region
        %p269 = scmp.lt.s32.totalorder %s20, 1
        %s270 = scalar_select %p269, %s20, 1
        %s271 = smul.addr %s270, 2
        %s272 = smul.addr %s271, 8
        %s273 = scalar_lea.vmem %s3, %s272
      $region52: #{mask_loss.1} parent=47 // pred_fallthru
        _
    $region48: #{mask_loss.1} parent=5 // pred_fallthru
      _
  $region6: #{mask_loss.1} parent=0 // loop_footer
    %s13 = sadd.s32 1, %s9
  $region7: #{mask_loss.1} parent=0 // loop_footer_branch
    %8 = sbr.rel target = $region3
  $region8: #{mask_loss.1} parent=0 // loop_exit
    _

</llo_original>
